<compile_context>
chip_gen: v5e
topology: v5e:2x2
jax: 0.10.0
libtpu: 0.0.40
codegen_flags: <defaults>
</compile_context>

<pallas_src>
import warnings

import jax
import jax.numpy as jnp
from jax.experimental import pallas as pl
from jax.experimental.pallas import tpu as pltpu

# Donation is best-effort; if XLA cannot reuse a donated buffer it only warns.
warnings.filterwarnings("ignore", message="Some donated buffers were not usable")

_LANES = 128


def _sublane_multiple(dtype) -> int:
    """Dtype-aware sublane packing: 8 for 32-bit, 16 for bf16, 32 for int8/fp8."""
    itemsize = max(int(dtype.itemsize), 1)
    return max(8, 32 // itemsize)


def _device_budgets():
    """(block_bytes, vmem_limit_bytes) tuned per TPU generation."""
    try:
        kind = jax.devices()[0].device_kind.lower()
    except Exception:  # pragma: no cover - defensive
        kind = ""
    if "v5" in kind or "5 lite" in kind:
        return 2 * 1024 * 1024, 24 * 1024 * 1024      # v5e: small scoped VMEM
    if "7" in kind:
        return 8 * 1024 * 1024, 48 * 1024 * 1024      # v7x: 64 MiB physical VMEM
    return 4 * 1024 * 1024, 32 * 1024 * 1024          # v6e and default


def _identity_copy_kernel(x_ref, o_ref):
    # Pure pass-through: the abstract Decoder defines no transformation.
    o_ref[...] = x_ref[...]


def _pallas_identity_impl(x):
    orig_shape = x.shape
    dtype = x.dtype
    total = x.size
    if total == 0:
        return x

    sub = _sublane_multiple(dtype)
    itemsize = int(dtype.itemsize)
    block_bytes, vmem_limit = _device_budgets()

    # Pad flat length to a multiple of (sub * 128) so every tile is full
    # (no masked lanes/sublanes, no single-sublane fallback block).
    min_chunk = sub * _LANES
    total_p = ((total + min_chunk - 1) // min_chunk) * min_chunk

    flat = x.reshape(total)
    if total_p != total:
        flat = jnp.pad(flat, (0, total_p - total))

    # Widest lane-dense last dim that keeps rows a multiple of `sub`.
    lanes = _LANES
    for cand in (4096, 2048, 1024, 512, 256):
        if total_p % (sub * cand) == 0:
            lanes = cand
            break
    rows = total_p // lanes
    x2d = flat.reshape(rows, lanes)

    # Block rows from the per-generation byte budget (multiple of `sub`).
    target_rows = max(sub, (block_bytes // (lanes * itemsize)) // sub * sub)
    block_rows = min(rows, target_rows)
    grid_len = pl.cdiv(rows, block_rows)

    # Prefer >= 2 grid steps so "parallel" can shard across v7x's 2 TCs.
    if grid_len == 1 and rows >= 2 * sub:
        block_rows = min(rows, ((rows + 1) // 2 + sub - 1) // sub * sub)
        grid_len = pl.cdiv(rows, block_rows)

    out2d = pl.pallas_call(
        _identity_copy_kernel,
        out_shape=jax.ShapeDtypeStruct(x2d.shape, dtype),
        grid=(grid_len,),
        in_specs=[pl.BlockSpec((block_rows, lanes), lambda i: (i, 0))],
        out_specs=pl.BlockSpec((block_rows, lanes), lambda i: (i, 0)),
        # With a donated input this alias is real (no second HBM stream).
        input_output_aliases={0: 0},
        compiler_params=pltpu.CompilerParams(
            dimension_semantics=("parallel",),
            vmem_limit_bytes=vmem_limit,
        ),
    )(x2d)

    out_flat = out2d.reshape(total_p)
    if total_p != total:
        out_flat = out_flat[:total]
    return out_flat.reshape(orig_shape)


# Divisible sizes reshape zero-copy onto the donated buffer -> real aliasing.
_pallas_identity_donating = jax.jit(_pallas_identity_impl, donate_argnums=0)
# Ragged sizes go through pad/slice; keep the caller's buffer alive.
_pallas_identity_copying = jax.jit(_pallas_identity_impl)


def _pallas_identity(x):
    sub = _sublane_multiple(x.dtype)
    if x.size > 0 and x.size % (sub * _LANES) == 0:
        return _pallas_identity_donating(x)
    return _pallas_identity_copying(x)


def decoder_init_state(enc_outputs, *args):
    """Stand-in for Decoder.init_state(enc_outputs, *args).

    The base class raises NotImplementedError; the only neutral realization is
    handing the encoder outputs through as the decoder state.
    """
    del args
    return enc_outputs


def decoder_forward(x, state):
    """Pallas stand-in for Decoder.forward(X, state).

    X goes through the Pallas identity kernel; `state` is returned untouched,
    matching the (output, state) convention of concrete d2l decoders.
    """
    return _pallas_identity(x), state


if __name__ == "__main__":
    key = jax.random.PRNGKey(0)
    kx, ks, kx2 = jax.random.split(key, 3)

    # Small seq-to-seq-style shapes: batch=2, seq=8, hidden=32.
    batch, seq, hidden = 2, 8, 32
    x = jax.random.normal(kx, (batch, seq, hidden), dtype=jnp.float32)
    enc_outputs = jax.random.normal(ks, (batch, seq, hidden), dtype=jnp.float32)

    state = decoder_init_state(enc_outputs)

    # Case 1: ragged total (512 elems) -> pad/slice path, no donation, safe to
    # read `x` afterwards.
    out, new_state = decoder_forward(x, state)
    out = jax.block_until_ready(out)
    assert out.shape == x.shape and out.dtype == x.dtype
    assert bool(jnp.allclose(out, x))
    assert bool(jnp.allclose(new_state, state))

    # Case 2: lane/sublane-divisible total (2*8*64 = 1024 elems) -> donated,
    # truly-aliased path.  Keep a reference copy since x2's buffer is donated.
    x2 = jax.random.normal(kx2, (batch, seq, 64), dtype=jnp.float32)
    x2_ref = jax.block_until_ready(x2 + 0.0)  # independent buffer for checking
    out2, new_state2 = decoder_forward(x2, state)
    out2 = jax.block_until_ready(out2)
    assert out2.shape == x2_ref.shape and out2.dtype == x2_ref.dtype
    assert bool(jnp.allclose(out2, x2_ref))
    assert bool(jnp.allclose(new_state2, state))

    print("KERNEL_OK")
</pallas_src>

<mosaic_0001>
module attributes {stable_mosaic.version = 11 : i64} {
  func.func @_identity_copy_kernel(%arg0: i32, %arg1: memref<8x128xf32, #tpu.memory_space<vmem>>, %arg2: memref<8x128xf32, #tpu.memory_space<vmem>>) attributes {dimension_semantics = [#tpu.dimension_semantics<parallel>], iteration_bounds = array<i64: 1>, scalar_prefetch = 0 : i64, scratch_operands = 0 : i64, tpu.core_type = #tpu.core_type<tc>, window_params = [{transform_indices = @transform_0, window_bounds = array<i64: 8, 128>}, {transform_indices = @transform_1, window_bounds = array<i64: 8, 128>}]} {
    %c0 = arith.constant 0 : index
    %c0_0 = arith.constant 0 : index
    %0 = vector.load %arg1[%c0, %c0_0] : memref<8x128xf32, #tpu.memory_space<vmem>>, vector<8x128xf32>
    %c0_1 = arith.constant 0 : index
    %c0_2 = arith.constant 0 : index
    %1 = vector.load %arg2[%c0_1, %c0_2] : memref<8x128xf32, #tpu.memory_space<vmem>>, vector<8x128xf32>
    tpu.vector_store %arg2[%c0_1, %c0_2], %0 {strides = array<i32>} : memref<8x128xf32, #tpu.memory_space<vmem>>, vector<8x128xf32>,
    return
  }
  func.func @transform_0(%arg0: i32) -> (i32, i32) {
    %c0_i32 = arith.constant 0 : i32
    %c0_i32_0 = arith.constant 0 : i32
    return %arg0, %c0_i32 : i32, i32
  }
  func.func @transform_1(%arg0: i32) -> (i32, i32) {
    %c0_i32 = arith.constant 0 : i32
    %c0_i32_0 = arith.constant 0 : i32
    return %arg0, %c0_i32 : i32, i32
  }
}

</mosaic_0001>

<llo_original>
// kernel: _pallas_identity_impl.1
$region0: #{_pallas_identity_impl.1}
  #allocation0 [shape = 'u32[]', space=smem, size = 0x4, offset = 0x4, fixed_abs, tag = 'smem constant byte address 0x4 - core index']
  #allocation1 [shape = 'u32[72,128]{1,0:T(1,128)}', space=vmem, size = 0x9000, scoped, tag = 'internal scratch']
  %s0 = inlined_call_operand.vmem [shape: f32[8,128], index: 0, kind: input, shape index: {}, may-alias: {0,1}]
  %s1 = inlined_call_operand.vmem [shape: f32[8,128], index: 1, kind: output, shape index: {}, may-alias: {0,1}]
  %s2 = sld [smem:[#allocation0]]
  $region14: #{_pallas_identity_impl.1} parent=0
    _
  %s4 = ssub.s32 1, %s2
  %s5 = scalar_select 0, %s4, %s2
  // Predicated region
  $region2: #{_pallas_identity_impl.1} parent=0 // pred_check
    _
  $region3: #{_pallas_identity_impl.1} parent=0 // pred_check_branch
    %7 = sbr.rel (0) target = $region5
  $region4: #{_pallas_identity_impl.1} parent=0 // pred_region
    _
  $region5: #{_pallas_identity_impl.1} parent=0 // pred_fallthru
    _
  %v8 = vld [vmem:[%s0] sm:$0xff]
  %9 = vst [vmem:[%s1] sm:$0xff] %v8
  // Predicated region
  $region6: #{_pallas_identity_impl.1} parent=0 // pred_check
    _
  $region7: #{_pallas_identity_impl.1} parent=0 // pred_check_branch
    %11 = sbr.rel (0) target = $region9
  $region8: #{_pallas_identity_impl.1} parent=0 // pred_region
    _
  $region9: #{_pallas_identity_impl.1} parent=0 // pred_fallthru
    _
  // Predicated region
  $region10: #{_pallas_identity_impl.1} parent=0 // pred_check
    _
  $region11: #{_pallas_identity_impl.1} parent=0 // pred_check_branch
    %13 = sbr.rel (0) target = $region13
  $region12: #{_pallas_identity_impl.1} parent=0 // pred_region
    _
  $region13: #{_pallas_identity_impl.1} parent=0 // pred_fallthru
    _

</llo_original>
